<compile_context>
chip_gen: v6e
topology: v6e:2x2x1
jax: 0.10.0
libtpu: 0.0.40
codegen_flags: <defaults>
</compile_context>

<pallas_src>
from functools import partial

import numpy as np
import jax
import jax.numpy as jnp
from jax import lax
from jax.experimental import pallas as pl
from jax.experimental.pallas import tpu as pltpu

VOCAB = 64           # real vocabulary ids: 0 .. VOCAB-1
HIDDEN = 32
NUM_CLASSES = 8
PAD_SLOT = VOCAB     # reserved pad id; its (zero-padded) W_fused row is zero

# lane/sublane-aligned padded sizes (padded once on the host, not per call)
V_PAD = 128          # vocab incl. pad slot, padded to lane width (K of matmul)
H_PAD = 128          # hidden padded to lane width (only used for the host fuse)
C_PAD = 128          # classes padded to lane width (lane-dense output store)

RSUB = 8             # row sub-block height inside the kernel (sublane tile)
SCHUNK = 8           # sequence chunk inside the kernel (keeps intermediates tiny)
MAX_ROWS = 128       # max batch rows per grid step (fills MXU M dim)


def _pow2_bucket(x, minimum):
    x = max(int(x), 1)
    return max(minimum, 1 << (x - 1).bit_length())


def _logits_kernel(tokens_ref, inv_len_ref, w_ref, b_ref, out_ref):
    """Synthetic model forward for one ROWS-row block.

    tokens_ref  : (ROWS, S)      int32   padded token ids (PAD_SLOT = pad)
    inv_len_ref : (ROWS, 1)      float32 1 / num_real_tokens (host-computed)
    w_ref       : (V_PAD, C_PAD) float32 host-fused  emb_pad @ w_pad
    b_ref       : (1, C_PAD)     float32 zero-padded classifier bias
    out_ref     : (ROWS, C_PAD)  float32 logits (lane-dense slab)
    """
    rows, seq = tokens_ref.shape
    vpad = w_ref.shape[0]
    n_rsub = rows // RSUB
    n_schunk = seq // SCHUNK

    # Lane iota, built once (JAX does not CSE broadcasts -> hoist out of loops).
    lane_iota = lax.broadcasted_iota(jnp.int32, (RSUB, SCHUNK, vpad), 2)

    # Bag-of-words counts, accumulated in int32 per 8-row sub-block over small
    # (8, 8, 128) compare chunks; converted to f32 once per sub-block.
    sub_counts = []
    for r in range(n_rsub):                      # static trip counts -> static slices
        acc = jnp.zeros((RSUB, vpad), jnp.int32)
        for c in range(n_schunk):
            toks = tokens_ref[pl.ds(r * RSUB, RSUB), pl.ds(c * SCHUNK, SCHUNK)]
            eq = (toks[:, :, None] == lane_iota).astype(jnp.int32)  # (8, 8, 128)
            acc = acc + jnp.sum(eq, axis=1)                          # (8, 128)
        sub_counts.append(acc.astype(jnp.float32))
    counts = sub_counts[0] if n_rsub == 1 else jnp.concatenate(sub_counts, axis=0)

    # Single fused MXU matmul; pad tokens hit zero rows of W_fused and drop out.
    logits = jnp.dot(counts, w_ref[...], preferred_element_type=jnp.float32)
    out_ref[...] = logits * inv_len_ref[...] + b_ref[...]


@partial(jax.jit, static_argnames=("rows",))
def _model_forward(tokens, inv_len, w_fused, bias, *, rows):
    """One pallas_call over the whole request. tokens: (B_pad, S) int32."""
    b_pad, seq = tokens.shape
    grid = (b_pad // rows,)
    return pl.pallas_call(
        _logits_kernel,
        out_shape=jax.ShapeDtypeStruct((b_pad, C_PAD), jnp.float32),
        grid_spec=pltpu.PrefetchScalarGridSpec(
            num_scalar_prefetch=0,
            grid=grid,
            in_specs=[
                pl.BlockSpec((rows, seq), lambda i: (i, 0)),
                pl.BlockSpec((rows, 1), lambda i: (i, 0)),
                pl.BlockSpec((V_PAD, C_PAD), lambda i: (0, 0)),
                pl.BlockSpec((1, C_PAD), lambda i: (0, 0)),
            ],
            out_specs=pl.BlockSpec((rows, C_PAD), lambda i: (i, 0)),
        ),
        compiler_params=pltpu.CompilerParams(
            dimension_semantics=("parallel",)),   # 2-TC sharding on v7x; free elsewhere
    )(tokens, inv_len, w_fused, bias)


class _Tokenizer:
    # Reserved pad slot OUTSIDE the real vocab (avoids id-0 / pad collision).
    pad_token_id = PAD_SLOT


class _Args:
    batch_size = 2   # kept for interface parity; see note in forward()


class ModelWrapper:
    """JAX/Pallas equivalent of the PyTorch ModelWrapper forward()."""

    def __init__(self, params, tokenizer, args):
        emb, w, b = params
        # Zero-pad parameters ONCE and pre-fuse the linear chain on the host
        # (exact f32 numpy matmul; no nonlinearity between pool and head).
        emb_np = np.zeros((V_PAD, H_PAD), np.float32)
        emb_np[:VOCAB, :HIDDEN] = np.asarray(emb, dtype=np.float32)
        w_np = np.zeros((H_PAD, C_PAD), np.float32)
        w_np[:HIDDEN, :NUM_CLASSES] = np.asarray(w, dtype=np.float32)
        b_np = np.zeros((1, C_PAD), np.float32)
        b_np[:, :NUM_CLASSES] = np.asarray(b, dtype=np.float32)
        self.w_fused = jnp.asarray(emb_np @ w_np)   # (V_PAD, C_PAD)
        self.b = jnp.asarray(b_np)                  # (1, C_PAD)
        self.tokenizer = tokenizer
        self.args = args
        assert self.tokenizer.pad_token_id == PAD_SLOT

    def forward(self, token_ids):
        # TODO(synk): tqdm progress bar omitted (pure host-side UI, no compute).
        # NOTE: the args.batch_size chunking + per-batch device sync of the
        # PyTorch wrapper is replaced by one bucketed device call; per-instance
        # logits are identical because padding is masked inside the model.
        ids = [[int(t) for t in s.split(' ') if t != ''] for s in token_ids]
        n = len(ids)
        pad_id = self.tokenizer.pad_token_id

        max_len = max((len(l) for l in ids), default=1)
        seq = _pow2_bucket(max_len, SCHUNK)            # power-of-2 seq bucket (>= 8)
        b_pad = _pow2_bucket(n, RSUB)                  # power-of-2 batch bucket (>= 8)
        # Rows per grid step: fill the MXU, amortize per-step overhead, but keep
        # >= 2 grid blocks when possible (v7x megacore sharding).
        rows = min(MAX_ROWS, b_pad // 2) if b_pad >= 2 * RSUB else b_pad

        tokens_np = np.full((b_pad, seq), pad_id, dtype=np.int32)
        inv_len_np = np.zeros((b_pad, 1), dtype=np.float32)
        for r, l in enumerate(ids):
            assert all(0 <= t < VOCAB for t in l), "token id out of vocab range"
            tokens_np[r, :len(l)] = l
            # Empty sequences collapse to the bias (denominator clamped to 1).
            inv_len_np[r, 0] = 1.0 / max(len(l), 1)

        logits = _model_forward(jnp.asarray(tokens_np), jnp.asarray(inv_len_np),
                                self.w_fused, self.b, rows=rows)
        logits = jax.block_until_ready(logits)
        # Slice off the padded batch rows and the padded class lanes on the host.
        return np.asarray(logits)[:n, :NUM_CLASSES]


def _init_params():
    key = jax.random.PRNGKey(0)
    k_emb, k_w, k_b = jax.random.split(key, 3)
    emb = jax.random.normal(k_emb, (VOCAB, HIDDEN), dtype=jnp.float32) * 0.02
    w = jax.random.normal(k_w, (HIDDEN, NUM_CLASSES), dtype=jnp.float32) * 0.1
    b = jax.random.normal(k_b, (1, NUM_CLASSES), dtype=jnp.float32) * 0.01
    return emb, w, b


if __name__ == "__main__":
    params = _init_params()
    wrapper = ModelWrapper(params, _Tokenizer(), _Args())

    # Whitespace-separated token-id strings, as the PyTorch forward expects.
    token_ids = [
        "1 2 3 4 5",
        "6 7 8",
        "9 10 11 12",
        "13 14",
    ]

    out = wrapper.forward(token_ids)           # (4, NUM_CLASSES) numpy array
    assert out.shape == (len(token_ids), NUM_CLASSES)
    assert np.all(np.isfinite(out))

    # Reference check (pooled-then-head order, pure numpy).  Tolerances account
    # for the host-fused emb@w association change and MXU pass precision.
    emb_np, w_np, b_np = (np.asarray(p, dtype=np.float32) for p in params)
    ref = []
    for s in token_ids:
        toks = np.asarray([int(t) for t in s.split(' ') if t != ''], dtype=np.int64)
        pooled = emb_np[toks].mean(axis=0)
        ref.append(pooled @ w_np + b_np[0])
    ref = np.stack(ref)
    np.testing.assert_allclose(out, ref, rtol=2e-2, atol=2e-3)

    print("KERNEL_OK")
</pallas_src>

<mosaic_0001>
module attributes {stable_mosaic.version = 11 : i64} {
  func.func @_logits_kernel(%arg0: i32, %arg1: memref<8x8xi32, #tpu.memory_space<vmem>>, %arg2: memref<8x1xf32, #tpu.memory_space<vmem>>, %arg3: memref<128x128xf32, #tpu.memory_space<vmem>>, %arg4: memref<1x128xf32, #tpu.memory_space<vmem>>, %arg5: memref<8x128xf32, #tpu.memory_space<vmem>>) attributes {dimension_semantics = [#tpu.dimension_semantics<parallel>], iteration_bounds = array<i64: 1>, scalar_prefetch = 0 : i64, scratch_operands = 0 : i64, tpu.core_type = #tpu.core_type<tc>, window_params = [{transform_indices = @transform_0, window_bounds = array<i64: 8, 8>}, {transform_indices = @transform_1, window_bounds = array<i64: 8, 1>}, {pipeline_mode = #tpu.pipeline_mode<synchronous>, transform_indices = @transform_2, window_bounds = array<i64: 128, 128>}, {pipeline_mode = #tpu.pipeline_mode<synchronous>, transform_indices = @transform_3, window_bounds = array<i64: 1, 128>}, {transform_indices = @transform_4, window_bounds = array<i64: 8, 128>}]} {
    %0 = tpu.iota {dimensions = array<i32: 2>} : vector<8x8x128xi32>
    %c0_i32 = arith.constant 0 : i32
    %1 = vector.broadcast %c0_i32 : i32 to vector<8x128xi32>
    %c0 = arith.constant 0 : index
    %c0_0 = arith.constant 0 : index
    %2 = vector.load %arg1[%c0, %c0_0] : memref<8x8xi32, #tpu.memory_space<vmem>>, vector<8x8xi32>
    %3 = vector.shape_cast %2 : vector<8x8xi32> to vector<8x8x1xi32>
    %4 = vector.broadcast %3 : vector<8x8x1xi32> to vector<8x8x128xi32>
    %5 = arith.cmpi eq, %4, %0 : vector<8x8x128xi32>
    %6 = arith.extui %5 : vector<8x8x128xi1> to vector<8x8x128xi32>
    %cst = arith.constant dense<0> : vector<8x128xi32>
    %7 = vector.multi_reduction <add>, %6, %cst [1] : vector<8x8x128xi32> to vector<8x128xi32>
    %8 = arith.addi %1, %7 : vector<8x128xi32>
    %9 = arith.sitofp %8 : vector<8x128xi32> to vector<8x128xf32>
    %c0_1 = arith.constant 0 : index
    %c0_2 = arith.constant 0 : index
    %10 = vector.load %arg3[%c0_1, %c0_2] : memref<128x128xf32, #tpu.memory_space<vmem>>, vector<128x128xf32>
    %cst_3 = arith.constant dense<0.000000e+00> : vector<8x128xf32>
    %11 = tpu.matmul %9, %10, %cst_3 {dimension_numbers = #tpu.dot_dimension_numbers<[1], [0], [0], [1], [0, 0, 1, 1], [], []>} : vector<8x128xf32>, vector<128x128xf32>, vector<8x128xf32> -> vector<8x128xf32>
    %c0_4 = arith.constant 0 : index
    %c0_5 = arith.constant 0 : index
    %12 = vector.load %arg2[%c0_4, %c0_5] : memref<8x1xf32, #tpu.memory_space<vmem>>, vector<8x1xf32>
    %13 = vector.broadcast %12 : vector<8x1xf32> to vector<8x128xf32>
    %14 = arith.mulf %11, %13 : vector<8x128xf32>
    %c0_6 = arith.constant 0 : index
    %c0_7 = arith.constant 0 : index
    %15 = vector.load %arg4[%c0_6, %c0_7] : memref<1x128xf32, #tpu.memory_space<vmem>>, vector<1x128xf32>
    %16 = vector.broadcast %15 : vector<1x128xf32> to vector<8x128xf32>
    %17 = arith.addf %14, %16 : vector<8x128xf32>
    %c0_8 = arith.constant 0 : index
    %c0_9 = arith.constant 0 : index
    %18 = vector.load %arg5[%c0_8, %c0_9] : memref<8x128xf32, #tpu.memory_space<vmem>>, vector<8x128xf32>
    tpu.vector_store %arg5[%c0_8, %c0_9], %17 {strides = array<i32>} : memref<8x128xf32, #tpu.memory_space<vmem>>, vector<8x128xf32>,
    return
  }
  func.func @transform_0(%arg0: i32) -> (i32, i32) {
    %c0_i32 = arith.constant 0 : i32
    %c0_i32_0 = arith.constant 0 : i32
    return %arg0, %c0_i32 : i32, i32
  }
  func.func @transform_1(%arg0: i32) -> (i32, i32) {
    %c0_i32 = arith.constant 0 : i32
    %c0_i32_0 = arith.constant 0 : i32
    return %arg0, %c0_i32 : i32, i32
  }
  func.func @transform_2(%arg0: i32) -> (i32, i32) {
    %c0_i32 = arith.constant 0 : i32
    %c0_i32_0 = arith.constant 0 : i32
    %c0_i32_1 = arith.constant 0 : i32
    return %c0_i32, %c0_i32_0 : i32, i32
  }
  func.func @transform_3(%arg0: i32) -> (i32, i32) {
    %c0_i32 = arith.constant 0 : i32
    %c0_i32_0 = arith.constant 0 : i32
    %c0_i32_1 = arith.constant 0 : i32
    return %c0_i32, %c0_i32_0 : i32, i32
  }
  func.func @transform_4(%arg0: i32) -> (i32, i32) {
    %c0_i32 = arith.constant 0 : i32
    %c0_i32_0 = arith.constant 0 : i32
    return %arg0, %c0_i32 : i32, i32
  }
}

</mosaic_0001>

<llo_original>
// kernel: _model_forward.1
$region0: #{_model_forward.1}
  #allocation0 [shape = 'u32[]', space=smem, size = 0x4, offset = 0x4, fixed_abs, tag = 'smem constant byte address 0x4 - core index']
  #allocation1 [shape = 'u32[144,128]{1,0:T(1,128)}', space=vmem, size = 0x12000, scoped, tag = 'internal scratch']
  %s0 = inlined_call_operand.vmem [shape: s32[8,8], index: 0, kind: input, shape index: {}]
  %s1 = inlined_call_operand.vmem [shape: f32[8,1], index: 1, kind: input, shape index: {}]
  %s2 = inlined_call_operand.hbm [shape: f32[128,128], index: 2, kind: input, shape index: {}]
  %s3 = inlined_call_operand.vmem [shape: f32[1,128], index: 3, kind: input, shape index: {}]
  %s4 = inlined_call_operand.hbm [shape: f32[8,128], index: 4, kind: output, shape index: {}]
  %s5 = sld [smem:[#allocation0]]
  $region30: #{_model_forward.1} parent=0
    _
  %s7 = ssub.s32 1, %s5
  %s8 = scalar_select 0, %s7, %s5
  $region1: #{_model_forward.1} parent=0
    #allocation2 [shape = 'u8[65536]{0}', space=vmem, size = 0x10000, scoped, tag = 'input window, operand 2, single buffered']
    #allocation3 [shape = 's32[1]{0}', space=sflag, size = 0x4, scoped, tag = 'scoped memory for _model_forward.1']
    #allocation4 [shape = 's32[1]{0}', space=sflag, size = 0x4, scoped, tag = 'scoped memory for _model_forward.1']
    #allocation5 [shape = 'u8[4096]{0}', space=vmem, size = 0x1000, scoped, tag = 'output window, operand 0, single buffered']
    %9 = vsyncpa [#allocation3], 0
    %10 = vsyncpa [#allocation4], 0
    // Predicated region
    $region2: #{_model_forward.1} parent=1 // pred_check
      _
    $region3: #{_model_forward.1} parent=1 // pred_check_branch
      %12 = sbr.rel (0) target = $region5
    $region4: #{_model_forward.1} parent=1 // pred_region
      _
    $region5: #{_model_forward.1} parent=1 // pred_fallthru
      _
    // Predicated region
    $region6: #{_model_forward.1} parent=1 // pred_check
      _
    $region7: #{_model_forward.1} parent=1 // pred_check_branch
      %14 = sbr.rel (0) target = $region9
    $region8: #{_model_forward.1} parent=1 // pred_region
      _
    $region9: #{_model_forward.1} parent=1 // pred_fallthru
      _
    // Predicated region
    $region10: #{_model_forward.1} parent=1 // pred_check
      _
    $region11: #{_model_forward.1} parent=1 // pred_check_branch
      %16 = sbr.rel (0) target = $region13
    $region12: #{_model_forward.1} parent=1 // pred_region
      %s18 = ssub.s32 2048, 2048
      %19 = vsyncadd [#allocation3], %s18
      %s20 = sshll.u32 [#allocation2], 4
      %s21 = int_to_ptr.vmem [resolvable:$true] %s20
      %26 = dma.hbm_to_vmem [thread:$0]  %s2, 2048, %s21, [#allocation3], 128, 128, 8
    $region13: #{_model_forward.1} parent=1 // pred_fallthru
      _
    // Predicated region
    $region14: #{_model_forward.1} parent=1 // pred_check
      _
    $region15: #{_model_forward.1} parent=1 // pred_check_branch
      %28 = sbr.rel (0) target = $region17
    $region16: #{_model_forward.1} parent=1 // pred_region
      _
    $region17: #{_model_forward.1} parent=1 // pred_fallthru
      _
    // Predicated region
    $region18: #{_model_forward.1} parent=1 // pred_check
      _
    $region19: #{_model_forward.1} parent=1 // pred_check_branch
      %30 = sbr.rel (0) target = $region21
    $region20: #{_model_forward.1} parent=1 // pred_region
      %31 = dma.done [#allocation3], 2048
    $region21: #{_model_forward.1} parent=1 // pred_fallthru
      _
    %v32 = vlaneseq
    %v33 = vand.u32 %v32, 127
    %v34 = vld [vmem:[%s0] sm:$0xff]
    %v35 = vlaneseq
    %v36 = vshrl.u32 %v35, 7
    %v37 = vsub.s32 0, %v36
    %v38 = vrot.slane %v34, %v37
    %40 = vbcast.lane.b32.xlu0 %v38, 256
    %v41 = vpop.permute.xlu0 %40
    %v42 = vlaneseq
    %v43 = vshrl.u32 %v42, 7
    %v44 = vsub.s32 1, %v43
    %v45 = vrot.slane %v34, %v44
    %47 = vbcast.lane.b32.xlu0 %v45, 256
    %v48 = vpop.permute.xlu0 %47
    %v49 = vlaneseq
    %v50 = vshrl.u32 %v49, 7
    %v51 = vsub.s32 2, %v50
    %v52 = vrot.slane %v34, %v51
    %54 = vbcast.lane.b32.xlu0 %v52, 256
    %v55 = vpop.permute.xlu0 %54
    %v56 = vlaneseq
    %v57 = vshrl.u32 %v56, 7
    %v58 = vsub.s32 3, %v57
    %v59 = vrot.slane %v34, %v58
    %61 = vbcast.lane.b32.xlu0 %v59, 256
    %v62 = vpop.permute.xlu0 %61
    %v63 = vlaneseq
    %v64 = vshrl.u32 %v63, 7
    %v65 = vsub.s32 4, %v64
    %v66 = vrot.slane %v34, %v65
    %68 = vbcast.lane.b32.xlu0 %v66, 256
    %v69 = vpop.permute.xlu0 %68
    %v70 = vlaneseq
    %v71 = vshrl.u32 %v70, 7
    %v72 = vsub.s32 5, %v71
    %v73 = vrot.slane %v34, %v72
    %75 = vbcast.lane.b32.xlu0 %v73, 256
    %v76 = vpop.permute.xlu0 %75
    %v77 = vlaneseq
    %v78 = vshrl.u32 %v77, 7
    %v79 = vsub.s32 6, %v78
    %v80 = vrot.slane %v34, %v79
    %82 = vbcast.lane.b32.xlu0 %v80, 256
    %v83 = vpop.permute.xlu0 %82
    %v84 = vlaneseq
    %v85 = vshrl.u32 %v84, 7
    %v86 = vsub.s32 7, %v85
    %v87 = vrot.slane %v34, %v86
    %89 = vbcast.lane.b32.xlu0 %v87, 256
    %v90 = vpop.permute.xlu0 %89
    %vm91 = vcmp.eq.s32.totalorder %v41, %v33
    %vm92 = vcmp.eq.s32.totalorder %v48, %v33
    %vm93 = vcmp.eq.s32.totalorder %v55, %v33
    %vm94 = vcmp.eq.s32.totalorder %v62, %v33
    %vm95 = vcmp.eq.s32.totalorder %v69, %v33
    %vm96 = vcmp.eq.s32.totalorder %v76, %v33
    %vm97 = vcmp.eq.s32.totalorder %v83, %v33
    %vm98 = vcmp.eq.s32.totalorder %v90, %v33
    %v99 = vsel %vm91, 1, 0
    %v100 = vsel %vm92, 1, 0
    %v101 = vsel %vm93, 1, 0
    %v102 = vsel %vm94, 1, 0
    %v103 = vsel %vm95, 1, 0
    %v104 = vsel %vm96, 1, 0
    %v105 = vsel %vm97, 1, 0
    %v106 = vsel %vm98, 1, 0
    %v107 = vrot.slane %v99, 4
    %v108 = vadd.s32 %v99, %v107
    %v109 = vrot.slane %v108, 2
    %v110 = vadd.s32 %v108, %v109
    %v111 = vrot.slane %v110, 1
    %v112 = vadd.s32 %v110, %v111
    %v113 = vrot.slane %v100, 4
    %v114 = vadd.s32 %v100, %v113
    %v115 = vrot.slane %v114, 2
    %v116 = vadd.s32 %v114, %v115
    %v117 = vrot.slane %v116, 1
    %v118 = vadd.s32 %v116, %v117
    %v119 = vrot.slane %v101, 4
    %v120 = vadd.s32 %v101, %v119
    %v121 = vrot.slane %v120, 2
    %v122 = vadd.s32 %v120, %v121
    %v123 = vrot.slane %v122, 1
    %v124 = vadd.s32 %v122, %v123
    %v125 = vrot.slane %v102, 4
    %v126 = vadd.s32 %v102, %v125
    %v127 = vrot.slane %v126, 2
    %v128 = vadd.s32 %v126, %v127
    %v129 = vrot.slane %v128, 1
    %v130 = vadd.s32 %v128, %v129
    %v131 = vrot.slane %v103, 4
    %v132 = vadd.s32 %v103, %v131
    %v133 = vrot.slane %v132, 2
    %v134 = vadd.s32 %v132, %v133
    %v135 = vrot.slane %v134, 1
    %v136 = vadd.s32 %v134, %v135
    %v137 = vrot.slane %v104, 4
    %v138 = vadd.s32 %v104, %v137
    %v139 = vrot.slane %v138, 2
    %v140 = vadd.s32 %v138, %v139
    %v141 = vrot.slane %v140, 1
    %v142 = vadd.s32 %v140, %v141
    %v143 = vrot.slane %v105, 4
    %v144 = vadd.s32 %v105, %v143
    %v145 = vrot.slane %v144, 2
    %v146 = vadd.s32 %v144, %v145
    %v147 = vrot.slane %v146, 1
    %v148 = vadd.s32 %v146, %v147
    %v149 = vrot.slane %v106, 4
    %v150 = vadd.s32 %v106, %v149
    %v151 = vrot.slane %v150, 2
    %v152 = vadd.s32 %v150, %v151
    %v153 = vrot.slane %v152, 1
    %v154 = vadd.s32 %v152, %v153
    %v155 = vcvt.s32.f32 %v112
    %v156 = vcvt.s32.f32 %v118
    %v157 = vcvt.s32.f32 %v124
    %v158 = vcvt.s32.f32 %v130
    %v159 = vcvt.s32.f32 %v136
    %v160 = vcvt.s32.f32 %v142
    %v161 = vcvt.s32.f32 %v148
    %v162 = vcvt.s32.f32 %v154
    %v163 = vld [vmem:[#allocation2] sm:$0xff]
    %v164 = vld [vmem:[#allocation2 + $0x8] sm:$0xff]
    %v165 = vld [vmem:[#allocation2 + $0x10] sm:$0xff]
    %v166 = vld [vmem:[#allocation2 + $0x18] sm:$0xff]
    %v167 = vld [vmem:[#allocation2 + $0x20] sm:$0xff]
    %v168 = vld [vmem:[#allocation2 + $0x28] sm:$0xff]
    %v169 = vld [vmem:[#allocation2 + $0x30] sm:$0xff]
    %v170 = vld [vmem:[#allocation2 + $0x38] sm:$0xff]
    %v171 = vld [vmem:[#allocation2 + $0x40] sm:$0xff]
    %v172 = vld [vmem:[#allocation2 + $0x48] sm:$0xff]
    %v173 = vld [vmem:[#allocation2 + $0x50] sm:$0xff]
    %v174 = vld [vmem:[#allocation2 + $0x58] sm:$0xff]
    %v175 = vld [vmem:[#allocation2 + $0x60] sm:$0xff]
    %v176 = vld [vmem:[#allocation2 + $0x68] sm:$0xff]
    %v177 = vld [vmem:[#allocation2 + $0x70] sm:$0xff]
    %v178 = vld [vmem:[#allocation2 + $0x78] sm:$0xff]
    %vm187 = vcmask 1041409
    %v188 = vsel %vm187, %v156, %v155
    %vm189 = vcmask 1042434
    %v190 = vsel %vm189, %v157, %v188
    %vm191 = vcmask 1043459
    %v192 = vsel %vm191, %v158, %v190
    %vm193 = vcmask 1044484
    %v194 = vsel %vm193, %v159, %v192
    %vm195 = vcmask 1045509
    %v196 = vsel %vm195, %v160, %v194
    %vm197 = vcmask 1046534
    %v198 = vsel %vm197, %v161, %v196
    %vm199 = vcmask 1047559
    %v200 = vsel %vm199, %v162, %v198
    %202 = vmatprep.subr.mxu0 0.0
    %203 = vmatpush1.msra.mxu0 %v178
    %204 = vmatprep.subr.mxu0 0.0
    %205 = vmatpush1.msra.mxu0 %v177
    %206 = vmatprep.subr.mxu0 0.0
    %207 = vmatpush1.msra.mxu0 %v176
    %208 = vmatprep.subr.mxu0 0.0
    %209 = vmatpush1.msra.mxu0 %v175
    %210 = vmatprep.subr.mxu0 0.0
    %211 = vmatpush1.msra.mxu0 %v174
    %212 = vmatprep.subr.mxu0 0.0
    %213 = vmatpush1.msra.mxu0 %v173
    %214 = vmatprep.subr.mxu0 0.0
    %215 = vmatpush1.msra.mxu0 %v172
    %216 = vmatprep.subr.mxu0 0.0
    %217 = vmatpush1.msra.mxu0 %v171
    %218 = vmatprep.subr.mxu0 0.0
    %219 = vmatpush1.msra.mxu0 %v170
    %220 = vmatprep.subr.mxu0 0.0
    %221 = vmatpush1.msra.mxu0 %v169
    %222 = vmatprep.subr.mxu0 0.0
    %223 = vmatpush1.msra.mxu0 %v168
    %224 = vmatprep.subr.mxu0 0.0
    %225 = vmatpush1.msra.mxu0 %v167
    %226 = vmatprep.subr.mxu0 0.0
    %227 = vmatpush1.msra.mxu0 %v166
    %228 = vmatprep.subr.mxu0 0.0
    %229 = vmatpush1.msra.mxu0 %v165
    %230 = vmatprep.subr.mxu0 0.0
    %231 = vmatpush1.msra.mxu0 %v164
    %232 = vmatprep.subr.mxu0 0.0
    %233 = vmatpush1.msra.mxu0 %v163
    %234 = vmatprep.subr.mxu0 0.0
    %235 = vmatpush2.msra.mxu0 0.0
    %236 = vmatprep.subr.mxu0 0.0
    %237 = vmatpush2.msra.mxu0 0.0
    %238 = vmatprep.subr.mxu0 0.0
    %239 = vmatpush2.msra.mxu0 0.0
    %240 = vmatprep.subr.mxu0 0.0
    %241 = vmatpush2.msra.mxu0 0.0
    %242 = vmatprep.subr.mxu0 0.0
    %243 = vmatpush2.msra.mxu0 0.0
    %244 = vmatprep.subr.mxu0 0.0
    %245 = vmatpush2.msra.mxu0 0.0
    %246 = vmatprep.subr.mxu0 0.0
    %247 = vmatpush2.msra.mxu0 0.0
    %248 = vmatprep.subr.mxu0 0.0
    %249 = vmatpush2.msra.mxu0 0.0
    %250 = vmatprep.subr.mxu0 0.0
    %251 = vmatpush2.msra.mxu0 0.0
    %252 = vmatprep.subr.mxu0 0.0
    %253 = vmatpush2.msra.mxu0 0.0
    %254 = vmatprep.subr.mxu0 0.0
    %255 = vmatpush2.msra.mxu0 0.0
    %256 = vmatprep.subr.mxu0 0.0
    %257 = vmatpush2.msra.mxu0 0.0
    %258 = vmatprep.subr.mxu0 0.0
    %259 = vmatpush2.msra.mxu0 0.0
    %260 = vmatprep.subr.mxu0 0.0
    %261 = vmatpush2.msra.mxu0 0.0
    %262 = vmatprep.subr.mxu0 0.0
    %263 = vmatpush2.msra.mxu0 0.0
    %264 = vmatprep.subr.mxu0 0.0
    %265 = vmatpush2.msra.mxu0 0.0
    %266 = vmatprep.mubr.f32.mxu0 0.0
    %267 = vmatmul.mubr.f32.gmra.mxu0 %v200
    %v268 = vpop.f32.mrf.mxu0
    %v269 = vadd.f32 0.0, %v268
    %v270 = vpop.f32.mrf.mxu0
    %271 = vdwg.mxu0
    %v272 = vld [vmem:[%s1] sm:$0xff]
    %274 = vset.pattern.permute.xlu0 0
    %275 = vperm.xlu0 %274, %v272
    %v276 = vpop.permute.xlu0 %275
    %v278 = vmul.f32 %v269, %v276
    %v279 = vld [vmem:[%s3] sm:$0x1]
    %v281 = vlaneseq
    %v282 = vshrl.u32 %v281, 7
    %v283 = vsub.s32 0, %v282
    %v284 = vrot.slane %v279, %v283
    %v286 = vadd.f32 %v278, %v284
    %287 = vst [vmem:[#allocation5] sm:$0xff] %v286
    // Predicated region
    $region22: #{_model_forward.1} parent=1 // pred_check
      _
    $region23: #{_model_forward.1} parent=1 // pred_check_branch
      %289 = sbr.rel (0) target = $region25
    $region24: #{_model_forward.1} parent=1 // pred_region
      %s291 = ssub.s32 128, 128
      %292 = vsyncadd [#allocation4], %s291
      %s294 = sshll.u32 [#allocation5], 4
      %s295 = int_to_ptr.vmem [resolvable:$true] %s294
      %297 = dma.vmem_to_hbm [thread:$0]  %s295, 128, %s4, [#allocation4]
    $region25: #{_model_forward.1} parent=1 // pred_fallthru
      _
    // Predicated region
    $region26: #{_model_forward.1} parent=1 // pred_check
      _
    $region27: #{_model_forward.1} parent=1 // pred_check_branch
      %299 = sbr.rel (0) target = $region29
    $region28: #{_model_forward.1} parent=1 // pred_region
      %300 = dma.done [#allocation4], 128
    $region29: #{_model_forward.1} parent=1 // pred_fallthru
      _
    %301 = vsyncpa [#allocation3], 1
    %302 = vsyncpa [#allocation4], 1

</llo_original>
